<compile_context>
chip_gen: v7x
topology: tpu7x:2x2x1
jax: 0.10.0
libtpu: 0.0.40
codegen_flags: <defaults>
</compile_context>

<pallas_src>
import numpy as np
import jax
import jax.numpy as jnp
from jax.experimental import pallas as pl
from jax.experimental.pallas import tpu as pltpu


# --------------------------------------------------------------------------
# Pallas kernel: for each image in the batch block, out = W @ x + b
# --------------------------------------------------------------------------
def _ksm_conv1x1_kernel(w_ref, b_ref, x_ref, o_ref):
    # w: (Cout, Cin) f32, b: (Cout, 1) f32,
    # x: (Bn, Cin, TL) native dtype, o: (Bn, Cout, TL)
    w = w_ref[...]
    bias = b_ref[...]
    for bi in range(x_ref.shape[0]):                       # static unroll
        acc = jnp.dot(w, x_ref[bi].astype(jnp.float32),    # MXU, f32 accumulate
                      preferred_element_type=jnp.float32)
        # Bias epilogue; if Mosaic ever materializes `acc` in VMEM this is
        # still only ~8% extra VMEM traffic on an HBM-bound op.
        o_ref[bi] = (acc + bias).astype(o_ref.dtype)


# --------------------------------------------------------------------------
# Tiling heuristics
# --------------------------------------------------------------------------
_LANE = 128
_MAX_TILE_L = 65536            # 36ch * 65536 * 4B = 9 MiB x-block
_TARGET_BATCH_BYTES = 4 << 20  # batch small images up to ~4 MiB per x-block
_MIN_SPLIT_BYTES = 2 << 20     # don't shrink tiles below ~2 MiB just for megacore
_MIN_GRID_STEPS = 4            # enough steps to shard across v7x's 2 TCs


def _cdiv(a, b):
    return -(-a // b)


def _choose_tiling(N, Cin, L, itemsize):
    if L <= _MAX_TILE_L:
        tile_l = L                      # full-extent spatial block (always legal)
        per_image = Cin * _cdiv(L, _LANE) * _LANE * itemsize
        bn_cap = max(1, int(_TARGET_BATCH_BYTES // max(per_image, 1)))
        bn = 1                          # largest divisor of N that fits the cap
        for d in range(min(N, bn_cap), 0, -1):
            if N % d == 0:
                bn = d
                break
    else:
        tile_l = _MAX_TILE_L
        bn = 1

    grid_n = N // bn
    grid_l = _cdiv(L, tile_l)

    # Guarantee enough grid steps for v7x megacore when tiles stay chunky.
    if grid_n * grid_l < _MIN_GRID_STEPS:
        want_l = _cdiv(_MIN_GRID_STEPS, grid_n)
        cand = max(1, _cdiv(_cdiv(L, _LANE), want_l)) * _LANE
        if bn * Cin * cand * itemsize >= _MIN_SPLIT_BYTES and cand < tile_l:
            tile_l = cand
            grid_l = _cdiv(L, tile_l)

    return bn, tile_l, grid_n, grid_l


# --------------------------------------------------------------------------
# Wrapper
# --------------------------------------------------------------------------
def ksm_conv1x1(x_nchw, w_oi11, b_o):
    """1x1 conv (Cin -> Cout) with bias on NCHW input, spatial axis on lanes."""
    N, Cin, H, W = x_nchw.shape
    Cout = w_oi11.shape[0]
    L = H * W
    out_dtype = x_nchw.dtype
    in_itemsize = x_nchw.dtype.itemsize

    x3 = x_nchw.reshape(N, Cin, L)                       # free, contiguous view
    wm = w_oi11.reshape(Cout, Cin).astype(jnp.float32)   # tiny (3, 36)
    bm = b_o.reshape(Cout, 1).astype(jnp.float32)

    bn, tile_l, grid_n, grid_l = _choose_tiling(N, Cin, L, in_itemsize)

    out = pl.pallas_call(
        _ksm_conv1x1_kernel,
        out_shape=jax.ShapeDtypeStruct((N, Cout, L), out_dtype),
        grid_spec=pltpu.PrefetchScalarGridSpec(
            num_scalar_prefetch=0,
            grid=(grid_n, grid_l),
            in_specs=[
                pl.BlockSpec((Cout, Cin), lambda n, i: (0, 0)),       # weights
                pl.BlockSpec((Cout, 1), lambda n, i: (0, 0)),         # bias
                pl.BlockSpec((bn, Cin, tile_l), lambda n, i: (n, 0, i)),
            ],
            out_specs=pl.BlockSpec((bn, Cout, tile_l), lambda n, i: (n, 0, i)),
        ),
        compiler_params=pltpu.CompilerParams(
            dimension_semantics=("parallel", "parallel"),   # megacore-friendly
            vmem_limit_bytes=32 * 1024 * 1024,
        ),
        cost_estimate=pl.CostEstimate(
            flops=2 * N * Cout * Cin * L,
            transcendentals=0,
            bytes_accessed=(N * L * (Cin * in_itemsize
                                     + Cout * jnp.dtype(out_dtype).itemsize)
                            + (Cin + 1) * Cout * 4),
        ),
    )(wm, bm, x3)

    return out.reshape(N, Cout, H, W)                      # free (contiguous)


def ksm_forward(params, x_nchw):
    """KSM.forward: a single 1x1 conv (36 -> 3 channels), bias=True."""
    return ksm_conv1x1(x_nchw, params["w"], params["b"])


# --------------------------------------------------------------------------
# Self-test
# --------------------------------------------------------------------------
if __name__ == "__main__":
    key = jax.random.PRNGKey(0)
    kx, kw, kb = jax.random.split(key, 3)

    N, Cin, H, W = 2, 36, 16, 16     # small shapes; KSM requires Cin == 36
    Cout = 3

    x = jax.random.normal(kx, (N, Cin, H, W), jnp.float32)
    bound = 1.0 / np.sqrt(Cin)       # deterministic stand-in for Conv2d init
    w = jax.random.uniform(kw, (Cout, Cin, 1, 1), jnp.float32, -bound, bound)
    b = jax.random.uniform(kb, (Cout,), jnp.float32, -bound, bound)
    params = {"w": w, "b": b}

    fwd = jax.jit(ksm_forward)
    out = fwd(params, x)
    jax.block_until_ready(out)

    # Pure-JAX reference == PyTorch nn.Conv2d(36, 3, kernel_size=1) forward.
    ref = (jnp.einsum("nchw,oc->nohw", x, w.reshape(Cout, Cin))
           + b[None, :, None, None])

    assert out.shape == (N, Cout, H, W), out.shape
    assert bool(jnp.all(jnp.isfinite(out)))
    np.testing.assert_allclose(np.asarray(out), np.asarray(ref),
                               rtol=1e-5, atol=1e-5)
    print("KERNEL_OK")
</pallas_src>

<mosaic_0001>
module attributes {stable_mosaic.version = 11 : i64} {
  func.func @_ksm_conv1x1_kernel(%arg0: i32, %arg1: i32, %arg2: memref<3x36xf32, #tpu.memory_space<vmem>>, %arg3: memref<3x1xf32, #tpu.memory_space<vmem>>, %arg4: memref<2x36x256xf32, #tpu.memory_space<vmem>>, %arg5: memref<2x3x256xf32, #tpu.memory_space<vmem>>) attributes {dimension_semantics = [#tpu.dimension_semantics<parallel>, #tpu.dimension_semantics<parallel>], iteration_bounds = array<i64: 1, 1>, scalar_prefetch = 0 : i64, scratch_operands = 0 : i64, tpu.core_type = #tpu.core_type<tc>, window_params = [{pipeline_mode = #tpu.pipeline_mode<synchronous>, transform_indices = @transform_0, window_bounds = array<i64: 3, 36>}, {pipeline_mode = #tpu.pipeline_mode<synchronous>, transform_indices = @transform_1, window_bounds = array<i64: 3, 1>}, {transform_indices = @transform_2, window_bounds = array<i64: 2, 36, 256>}, {transform_indices = @transform_3, window_bounds = array<i64: 2, 3, 256>}]} {
    %c0 = arith.constant 0 : index
    %c0_0 = arith.constant 0 : index
    %0 = vector.load %arg2[%c0, %c0_0] : memref<3x36xf32, #tpu.memory_space<vmem>>, vector<3x36xf32>
    %c0_1 = arith.constant 0 : index
    %c0_2 = arith.constant 0 : index
    %1 = vector.load %arg3[%c0_1, %c0_2] : memref<3x1xf32, #tpu.memory_space<vmem>>, vector<3x1xf32>
    %c0_3 = arith.constant 0 : index
    %c0_4 = arith.constant 0 : index
    %c0_5 = arith.constant 0 : index
    %2 = vector.load %arg4[%c0_3, %c0_4, %c0_5] : memref<2x36x256xf32, #tpu.memory_space<vmem>>, vector<1x36x256xf32>
    %3 = vector.shape_cast %2 : vector<1x36x256xf32> to vector<36x256xf32>
    %cst = arith.constant dense<0.000000e+00> : vector<3x256xf32>
    %4 = tpu.matmul %0, %3, %cst {dimension_numbers = #tpu.dot_dimension_numbers<[1], [0], [0], [1], [0, 0, 1, 1], [], []>} : vector<3x36xf32>, vector<36x256xf32>, vector<3x256xf32> -> vector<3x256xf32>
    %5 = vector.broadcast %1 : vector<3x1xf32> to vector<3x256xf32>
    %6 = arith.addf %4, %5 : vector<3x256xf32>
    %c0_6 = arith.constant 0 : index
    %c0_7 = arith.constant 0 : index
    %c0_8 = arith.constant 0 : index
    %7 = vector.load %arg5[%c0_6, %c0_7, %c0_8] : memref<2x3x256xf32, #tpu.memory_space<vmem>>, vector<1x3x256xf32>
    %8 = vector.shape_cast %7 : vector<1x3x256xf32> to vector<3x256xf32>
    %9 = vector.shape_cast %6 : vector<3x256xf32> to vector<1x3x256xf32>
    tpu.vector_store %arg5[%c0_6, %c0_7, %c0_8], %9 {strides = array<i32>} : memref<2x3x256xf32, #tpu.memory_space<vmem>>, vector<1x3x256xf32>,
    %c1 = arith.constant 1 : index
    %c0_9 = arith.constant 0 : index
    %c0_10 = arith.constant 0 : index
    %10 = vector.load %arg4[%c1, %c0_9, %c0_10] : memref<2x36x256xf32, #tpu.memory_space<vmem>>, vector<1x36x256xf32>
    %11 = vector.shape_cast %10 : vector<1x36x256xf32> to vector<36x256xf32>
    %cst_11 = arith.constant dense<0.000000e+00> : vector<3x256xf32>
    %12 = tpu.matmul %0, %11, %cst_11 {dimension_numbers = #tpu.dot_dimension_numbers<[1], [0], [0], [1], [0, 0, 1, 1], [], []>} : vector<3x36xf32>, vector<36x256xf32>, vector<3x256xf32> -> vector<3x256xf32>
    %13 = vector.broadcast %1 : vector<3x1xf32> to vector<3x256xf32>
    %14 = arith.addf %12, %13 : vector<3x256xf32>
    %c1_12 = arith.constant 1 : index
    %c0_13 = arith.constant 0 : index
    %c0_14 = arith.constant 0 : index
    %15 = vector.load %arg5[%c1_12, %c0_13, %c0_14] : memref<2x3x256xf32, #tpu.memory_space<vmem>>, vector<1x3x256xf32>
    %16 = vector.shape_cast %15 : vector<1x3x256xf32> to vector<3x256xf32>
    %17 = vector.shape_cast %14 : vector<3x256xf32> to vector<1x3x256xf32>
    tpu.vector_store %arg5[%c1_12, %c0_13, %c0_14], %17 {strides = array<i32>} : memref<2x3x256xf32, #tpu.memory_space<vmem>>, vector<1x3x256xf32>,
    return
  }
  func.func @transform_0(%arg0: i32, %arg1: i32) -> (i32, i32) {
    %c0_i32 = arith.constant 0 : i32
    %c0_i32_0 = arith.constant 0 : i32
    %c0_i32_1 = arith.constant 0 : i32
    return %c0_i32, %c0_i32_0 : i32, i32
  }
  func.func @transform_1(%arg0: i32, %arg1: i32) -> (i32, i32) {
    %c0_i32 = arith.constant 0 : i32
    %c0_i32_0 = arith.constant 0 : i32
    %c0_i32_1 = arith.constant 0 : i32
    return %c0_i32, %c0_i32_0 : i32, i32
  }
  func.func @transform_2(%arg0: i32, %arg1: i32) -> (i32, i32, i32) {
    %c0_i32 = arith.constant 0 : i32
    %c0_i32_0 = arith.constant 0 : i32
    return %arg0, %c0_i32, %arg1 : i32, i32, i32
  }
  func.func @transform_3(%arg0: i32, %arg1: i32) -> (i32, i32, i32) {
    %c0_i32 = arith.constant 0 : i32
    %c0_i32_0 = arith.constant 0 : i32
    return %arg0, %c0_i32, %arg1 : i32, i32, i32
  }
}

</mosaic_0001>

<llo_original>
// kernel: ksm_forward.1
$region0: #{ksm_forward.1}
  #allocation0 [shape = 'u32[]', space=smem, size = 0x4, offset = 0x4, fixed_abs, tag = 'smem constant byte address 0x4 - core index']
  #allocation1 [shape = 'u32[144,128]{1,0:T(1,128)}', space=vmem, size = 0x12000, scoped, tag = 'internal scratch']
  %s0 = inlined_call_operand.vmem [shape: f32[3,36], index: 0, kind: input, shape index: {}]
  %s1 = inlined_call_operand.vmem [shape: f32[3,1], index: 1, kind: input, shape index: {}]
  %s2 = inlined_call_operand.vmem [shape: f32[2,36,256], index: 2, kind: input, shape index: {}]
  %s3 = inlined_call_operand.vmem [shape: f32[2,3,256], index: 3, kind: output, shape index: {}]
  %s4 = sld [smem:[#allocation0]]
  $region22: #{ksm_forward.1} parent=0
    _
  %s6 = ssub.s32 1, %s4
  %s7 = scalar_select 0, %s6, %s4
  // Predicated region
  $region2: #{ksm_forward.1} parent=0 // pred_check
    _
  $region3: #{ksm_forward.1} parent=0 // pred_check_branch
    %9 = sbr.rel (0) target = $region5
  $region4: #{ksm_forward.1} parent=0 // pred_region
    _
  $region5: #{ksm_forward.1} parent=0 // pred_fallthru
    _
  // Predicated region
  $region6: #{ksm_forward.1} parent=0 // pred_check
    _
  $region7: #{ksm_forward.1} parent=0 // pred_check_branch
    %11 = sbr.rel (0) target = $region9
  $region8: #{ksm_forward.1} parent=0 // pred_region
    _
  $region9: #{ksm_forward.1} parent=0 // pred_fallthru
    _
  // Predicated region
  $region10: #{ksm_forward.1} parent=0 // pred_check
    _
  $region11: #{ksm_forward.1} parent=0 // pred_check_branch
    %13 = sbr.rel (0) target = $region13
  $region12: #{ksm_forward.1} parent=0 // pred_region
    _
  $region13: #{ksm_forward.1} parent=0 // pred_fallthru
    _
  %v14 = vld [vmem:[%s0] sm:$0x7]
  %v15 = vld [vmem:[%s1] sm:$0x7]
  %v16 = vld [vmem:[%s2] sm:$0xff]
  %v17 = vld [vmem:[%s2 + $0x8] sm:$0xff]
  %v18 = vld [vmem:[%s2 + $0x10] sm:$0xff]
  %v19 = vld [vmem:[%s2 + $0x18] sm:$0xff]
  %v20 = vld [vmem:[%s2 + $0x20] sm:$0xff]
  %v21 = vld [vmem:[%s2 + $0x28] sm:$0xff]
  %v22 = vld [vmem:[%s2 + $0x30] sm:$0xff]
  %v23 = vld [vmem:[%s2 + $0x38] sm:$0xff]
  %v24 = vld [vmem:[%s2 + $0x40] sm:$0xf]
  %v25 = vld [vmem:[%s2 + $0x48] sm:$0xf]
  %27 = vset.pattern.permute.xlu0 0
  %28 = vperm.xlu0 %27, %v15
  %v29 = vpop.permute.xlu0 %28
  %vm31 = vcmask 293888
  %v33 = vsel %vm31, %v14, 0
  %vm35 = vcmask 1043456
  %v37 = vsel %vm35, %v24, 0
  %v40 = vsel %vm35, %v25, 0
  %42 = vmatprep.subr.mxu0 %v17
  %43 = vmatpush1.msra.mxu0 %v16
  %44 = vmatprep.subr.mxu0 %v19
  %45 = vmatpush1.msra.mxu0 %v18
  %46 = vmatprep.subr.mxu0 %v21
  %47 = vmatpush1.msra.mxu0 %v20
  %48 = vmatprep.subr.mxu0 %v23
  %49 = vmatpush1.msra.mxu0 %v22
  %50 = vmatprep.subr.mxu0 %v40
  %51 = vmatpush1.msra.mxu0 %v37
  %52 = vmatprep.subr.mxu0 0.0
  %53 = vmatpush1.msra.mxu0 0.0
  %54 = vmatprep.subr.mxu0 0.0
  %55 = vmatpush1.msra.mxu0 0.0
  %56 = vmatprep.subr.mxu0 0.0
  %57 = vmatpush1.msra.mxu0 0.0
  %58 = vmatprep.subr.mxu0 0.0
  %59 = vmatpush1.msra.mxu0 0.0
  %60 = vmatprep.subr.mxu0 0.0
  %61 = vmatpush1.msra.mxu0 0.0
  %62 = vmatprep.subr.mxu0 0.0
  %63 = vmatpush1.msra.mxu0 0.0
  %64 = vmatprep.subr.mxu0 0.0
  %65 = vmatpush1.msra.mxu0 0.0
  %66 = vmatprep.subr.mxu0 0.0
  %67 = vmatpush1.msra.mxu0 0.0
  %68 = vmatprep.subr.mxu0 0.0
  %69 = vmatpush1.msra.mxu0 0.0
  %70 = vmatprep.subr.mxu0 0.0
  %71 = vmatpush1.msra.mxu0 0.0
  %72 = vmatprep.subr.mxu0 0.0
  %73 = vmatpush1.msra.mxu0 0.0
  %74 = vmatprep.subr.mxu0 0.0
  %75 = vmatpush1.msra.mxu0 0.0
  %76 = vmatprep.subr.mxu0 0.0
  %77 = vmatpush1.msra.mxu0 0.0
  %78 = vmatprep.subr.mxu0 0.0
  %79 = vmatpush1.msra.mxu0 0.0
  %80 = vmatprep.subr.mxu0 0.0
  %81 = vmatpush1.msra.mxu0 0.0
  %82 = vmatprep.subr.mxu0 0.0
  %83 = vmatpush1.msra.mxu0 0.0
  %84 = vmatprep.subr.mxu0 0.0
  %85 = vmatpush1.msra.mxu0 0.0
  %86 = vmatprep.subr.mxu0 0.0
  %87 = vmatpush1.msra.mxu0 0.0
  %88 = vmatprep.subr.mxu0 0.0
  %89 = vmatpush1.msra.mxu0 0.0
  %90 = vmatprep.subr.mxu0 0.0
  %91 = vmatpush1.msra.mxu0 0.0
  %92 = vmatprep.subr.mxu0 0.0
  %93 = vmatpush1.msra.mxu0 0.0
  %94 = vmatprep.subr.mxu0 0.0
  %95 = vmatpush1.msra.mxu0 0.0
  %96 = vmatprep.subr.mxu0 0.0
  %97 = vmatpush1.msra.mxu0 0.0
  %98 = vmatprep.subr.mxu0 0.0
  %99 = vmatpush1.msra.mxu0 0.0
  %100 = vmatprep.subr.mxu0 0.0
  %101 = vmatpush1.msra.mxu0 0.0
  %102 = vmatprep.subr.mxu0 0.0
  %103 = vmatpush1.msra.mxu0 0.0
  %104 = vmatprep.subr.mxu0 0.0
  %105 = vmatpush1.msra.mxu0 0.0
  %106 = vmatprep.mubr.f32.mxu0 0.0
  %107 = vmatmul.mubr.f32.gmra.mrb[0].mxu0 %v33
  %v108 = vpop.f32.mrb[0].mxu0
  %v109 = vadd.f32 %v29, %v108
  %v110 = vpop.f32.mrb[0].mxu0
  %v111 = vadd.f32 %v29, %v110
  %112 = vdwg.mxu0
  %v115 = vcombine.low %v109, %v111
  %117 = vst [vmem:[%s3] sm:$0x77] %v115
  %s118 = scalar_lea.vmem %s2, 80
  %v119 = vld [vmem:[%s118] sm:$0xff]
  %v120 = vld [vmem:[%s118 + $0x8] sm:$0xff]
  %v121 = vld [vmem:[%s118 + $0x10] sm:$0xff]
  %v122 = vld [vmem:[%s118 + $0x18] sm:$0xff]
  %v123 = vld [vmem:[%s118 + $0x20] sm:$0xff]
  %v124 = vld [vmem:[%s118 + $0x28] sm:$0xff]
  %v125 = vld [vmem:[%s118 + $0x30] sm:$0xff]
  %v126 = vld [vmem:[%s118 + $0x38] sm:$0xff]
  %v127 = vld [vmem:[%s118 + $0x40] sm:$0xf]
  %v128 = vld [vmem:[%s118 + $0x48] sm:$0xf]
  %v130 = vsel %vm35, %v127, 0
  %v133 = vsel %vm35, %v128, 0
  %135 = vmatprep.subr.mxu0 %v120
  %136 = vmatpush1.msra.mxu0 %v119
  %137 = vmatprep.subr.mxu0 %v122
  %138 = vmatpush1.msra.mxu0 %v121
  %139 = vmatprep.subr.mxu0 %v124
  %140 = vmatpush1.msra.mxu0 %v123
  %141 = vmatprep.subr.mxu0 %v126
  %142 = vmatpush1.msra.mxu0 %v125
  %143 = vmatprep.subr.mxu0 %v133
  %144 = vmatpush1.msra.mxu0 %v130
  %145 = vmatprep.subr.mxu0 0.0
  %146 = vmatpush1.msra.mxu0 0.0
  %147 = vmatprep.subr.mxu0 0.0
  %148 = vmatpush1.msra.mxu0 0.0
  %149 = vmatprep.subr.mxu0 0.0
  %150 = vmatpush1.msra.mxu0 0.0
  %151 = vmatprep.subr.mxu0 0.0
  %152 = vmatpush1.msra.mxu0 0.0
  %153 = vmatprep.subr.mxu0 0.0
  %154 = vmatpush1.msra.mxu0 0.0
  %155 = vmatprep.subr.mxu0 0.0
  %156 = vmatpush1.msra.mxu0 0.0
  %157 = vmatprep.subr.mxu0 0.0
  %158 = vmatpush1.msra.mxu0 0.0
  %159 = vmatprep.subr.mxu0 0.0
  %160 = vmatpush1.msra.mxu0 0.0
  %161 = vmatprep.subr.mxu0 0.0
  %162 = vmatpush1.msra.mxu0 0.0
  %163 = vmatprep.subr.mxu0 0.0
  %164 = vmatpush1.msra.mxu0 0.0
  %165 = vmatprep.subr.mxu0 0.0
  %166 = vmatpush1.msra.mxu0 0.0
  %167 = vmatprep.subr.mxu0 0.0
  %168 = vmatpush1.msra.mxu0 0.0
  %169 = vmatprep.subr.mxu0 0.0
  %170 = vmatpush1.msra.mxu0 0.0
  %171 = vmatprep.subr.mxu0 0.0
  %172 = vmatpush1.msra.mxu0 0.0
  %173 = vmatprep.subr.mxu0 0.0
  %174 = vmatpush1.msra.mxu0 0.0
  %175 = vmatprep.subr.mxu0 0.0
  %176 = vmatpush1.msra.mxu0 0.0
  %177 = vmatprep.subr.mxu0 0.0
  %178 = vmatpush1.msra.mxu0 0.0
  %179 = vmatprep.subr.mxu0 0.0
  %180 = vmatpush1.msra.mxu0 0.0
  %181 = vmatprep.subr.mxu0 0.0
  %182 = vmatpush1.msra.mxu0 0.0
  %183 = vmatprep.subr.mxu0 0.0
  %184 = vmatpush1.msra.mxu0 0.0
  %185 = vmatprep.subr.mxu0 0.0
  %186 = vmatpush1.msra.mxu0 0.0
  %187 = vmatprep.subr.mxu0 0.0
  %188 = vmatpush1.msra.mxu0 0.0
  %189 = vmatprep.subr.mxu0 0.0
  %190 = vmatpush1.msra.mxu0 0.0
  %191 = vmatprep.subr.mxu0 0.0
  %192 = vmatpush1.msra.mxu0 0.0
  %193 = vmatprep.subr.mxu0 0.0
  %194 = vmatpush1.msra.mxu0 0.0
  %195 = vmatprep.subr.mxu0 0.0
  %196 = vmatpush1.msra.mxu0 0.0
  %197 = vmatprep.subr.mxu0 0.0
  %198 = vmatpush1.msra.mxu0 0.0
  %199 = vmatprep.mubr.f32.mxu0 0.0
  %200 = vmatmul.mubr.f32.gmra.mrb[0].mxu0 %v33
  %v201 = vpop.f32.mrb[0].mxu0
  %v202 = vadd.f32 %v29, %v201
  %v203 = vpop.f32.mrb[0].mxu0
  %v204 = vadd.f32 %v29, %v203
  %205 = vdwg.mxu0
  %v208 = vcombine.low %v202, %v204
  %s210 = scalar_lea.vmem %s3, 8
  %211 = vst [vmem:[%s210] sm:$0x77] %v208
  // Predicated region
  $region14: #{ksm_forward.1} parent=0 // pred_check
    _
  $region15: #{ksm_forward.1} parent=0 // pred_check_branch
    %213 = sbr.rel (0) target = $region17
  $region16: #{ksm_forward.1} parent=0 // pred_region
    _
  $region17: #{ksm_forward.1} parent=0 // pred_fallthru
    _
  // Predicated region
  $region18: #{ksm_forward.1} parent=0 // pred_check
    _
  $region19: #{ksm_forward.1} parent=0 // pred_check_branch
    %215 = sbr.rel (0) target = $region21
  $region20: #{ksm_forward.1} parent=0 // pred_region
    _
  $region21: #{ksm_forward.1} parent=0 // pred_fallthru
    _

</llo_original>
